<compile_context>
chip_gen: v7x
topology: tpu7x:2x2x1
jax: 0.10.0
libtpu: 0.0.40
codegen_flags: <defaults>
</compile_context>

<pallas_src>
import functools

import jax
import jax.numpy as jnp
from jax.experimental import pallas as pl
from jax.experimental.pallas import tpu as pltpu


def _round_up(n, m):
    return ((n + m - 1) // m) * m


def mlp_kernel(x_ref, w1_ref, b1_ref, w2_ref, b2_ref, w3_ref, b3_ref, o_ref):
    # x: (TB, IN) f32     w1: (IN, H) f32     b1/b2: (1, H) f32
    # w2: (H, H) f32      w3: (H, OUT) f32    b3: (1, OUT) f32
    # o:  (TB, OUT) f32
    x = x_ref[...]
    w1 = w1_ref[...]

    # ---- Layer 1 on the VPU: K == input_dim (2) is tiny, an MXU pass would be
    # mostly drain.  Unrolled broadcast FMAs: (TB,1) * (1,H) per input feature.
    h1 = b1_ref[...]                        # (1, H) -> broadcasts to (TB, H)
    for k in range(x.shape[1]):             # input_dim is small & static
        h1 = h1 + x[:, k:k + 1] * w1[k:k + 1, :]
    h1 = jnp.maximum(h1, 0.0)

    # ---- Layer 2 on the MXU, f32 operands / f32 accumulate.
    h2 = jnp.dot(h1, w2_ref[...], preferred_element_type=jnp.float32)
    h2 = jnp.maximum(h2 + b2_ref[...], 0.0)

    # ---- Layer 3 on the MXU; narrow (TB, 2) output -> tiny masked store,
    # negligible next to the DMA savings of not padding to 128 lanes.
    out = jnp.dot(h2, w3_ref[...], preferred_element_type=jnp.float32)
    o_ref[...] = (out + b3_ref[...]).astype(o_ref.dtype)


@functools.partial(jax.jit, static_argnames=("block_batch",))
def simple_rl_policy_forward(x, params, block_batch=4096):
    """Fused MLP forward. x: (B, input_dim) float32 -> (B, 2) float32 logits."""
    w1, b1, w2, b2, w3, b3 = params
    B, IN = x.shape
    H = w1.shape[1]
    OUT = w3.shape[1]

    # Tile size must be a multiple of 8 (sublane granularity of block_shape).
    block_batch = _round_up(max(block_batch, 8), 8)

    # Pad rows only to the next multiple of 8 (<= 7 extra rows), NOT to a
    # multiple of the tile -- avoids an extra full pass over x in HBM.
    B8 = _round_up(B, 8)
    x_p = x if B8 == B else jnp.pad(x, ((0, B8 - B), (0, 0)))

    # Batch tile: large enough to amortize per-step pipeline overhead, but
    # capped at ~B/2 so the grid has >=2 steps whenever B allows it
    # (lets v7x's two TensorCores split the "parallel" batch axis).
    TB = min(block_batch, max(8, _round_up(pl.cdiv(B8, 2), 8)))
    grid = (pl.cdiv(B8, TB),)

    flops = 2 * B8 * (IN * H + H * H + H * OUT)
    param_bytes = 4 * (IN * H + H + H * H + H + H * OUT + OUT)
    bytes_accessed = B8 * (IN + OUT) * 4 + param_bytes

    out_p = pl.pallas_call(
        mlp_kernel,
        out_shape=jax.ShapeDtypeStruct((B8, OUT), jnp.float32),
        grid_spec=pltpu.PrefetchScalarGridSpec(
            num_scalar_prefetch=0,
            grid=grid,
            in_specs=[
                pl.BlockSpec((TB, IN), lambda i: (i, 0)),   # x: streamed over batch
                pl.BlockSpec((IN, H), lambda i: (0, 0)),    # w1: resident
                pl.BlockSpec((1, H), lambda i: (0, 0)),     # b1: resident
                pl.BlockSpec((H, H), lambda i: (0, 0)),     # w2: resident
                pl.BlockSpec((1, H), lambda i: (0, 0)),     # b2: resident
                pl.BlockSpec((H, OUT), lambda i: (0, 0)),   # w3: resident
                pl.BlockSpec((1, OUT), lambda i: (0, 0)),   # b3: resident
            ],
            out_specs=pl.BlockSpec((TB, OUT), lambda i: (i, 0)),
        ),
        compiler_params=pltpu.CompilerParams(
            # Batch axis is embarrassingly parallel -> shard across v7x's 2 TCs.
            dimension_semantics=("parallel",),
        ),
        cost_estimate=pl.CostEstimate(
            flops=flops, transcendentals=0, bytes_accessed=bytes_accessed),
    )(x_p, w1, b1, w2, b2, w3, b3)

    return out_p if B8 == B else out_p[:B]


def init_params(key, input_dim=2, hidden_dim=32, out_dim=2):
    """Deterministic init mimicking PyTorch's default Linear init
    (uniform in [-1/sqrt(fan_in), 1/sqrt(fan_in)])."""
    ks = jax.random.split(key, 6)

    def linear(kw, kb, fan_in, fan_out):
        bound = 1.0 / jnp.sqrt(jnp.float32(fan_in))
        w = jax.random.uniform(kw, (fan_in, fan_out), jnp.float32, -bound, bound)
        b = jax.random.uniform(kb, (1, fan_out), jnp.float32, -bound, bound)
        return w, b

    w1, b1 = linear(ks[0], ks[1], input_dim, hidden_dim)
    w2, b2 = linear(ks[2], ks[3], hidden_dim, hidden_dim)
    w3, b3 = linear(ks[4], ks[5], hidden_dim, out_dim)
    return (w1, b1, w2, b2, w3, b3)


def reference_forward(x, params):
    """Pure-JAX f32 reference matching the PyTorch module's forward."""
    w1, b1, w2, b2, w3, b3 = params
    h1 = jnp.maximum(x @ w1 + b1, 0.0)
    h2 = jnp.maximum(h1 @ w2 + b2, 0.0)
    return h2 @ w3 + b3


if __name__ == "__main__":
    key = jax.random.PRNGKey(0)
    k_param, k_x1, k_x2 = jax.random.split(key, 3)

    input_dim, hidden_dim = 2, 32
    params = init_params(k_param, input_dim=input_dim, hidden_dim=hidden_dim, out_dim=2)

    # Example state features: (batch, 2) -> [normalized length, token probability]
    batch = 8
    x = jax.random.uniform(k_x1, (batch, input_dim), jnp.float32)
    out = jax.block_until_ready(simple_rl_policy_forward(x, params))
    ref = reference_forward(x, params)
    assert out.shape == (batch, 2)
    assert jnp.allclose(out, ref, atol=1e-3, rtol=1e-3), (
        f"max abs err {jnp.max(jnp.abs(out - ref))}")

    # Second shape: exercises row padding (B not multiple of 8) + a 2-step grid
    # with a partial tail block.
    batch2 = 37
    x2 = jax.random.uniform(k_x2, (batch2, input_dim), jnp.float32)
    out2 = jax.block_until_ready(simple_rl_policy_forward(x2, params))
    ref2 = reference_forward(x2, params)
    assert out2.shape == (batch2, 2)
    assert jnp.allclose(out2, ref2, atol=1e-3, rtol=1e-3), (
        f"max abs err {jnp.max(jnp.abs(out2 - ref2))}")

    print("KERNEL_OK")
</pallas_src>

<mosaic_0001>
module attributes {stable_mosaic.version = 11 : i64} {
  func.func @mlp_kernel(%arg0: i32, %arg1: memref<8x2xf32, #tpu.memory_space<vmem>>, %arg2: memref<2x32xf32, #tpu.memory_space<vmem>>, %arg3: memref<1x32xf32, #tpu.memory_space<vmem>>, %arg4: memref<32x32xf32, #tpu.memory_space<vmem>>, %arg5: memref<1x32xf32, #tpu.memory_space<vmem>>, %arg6: memref<32x2xf32, #tpu.memory_space<vmem>>, %arg7: memref<1x2xf32, #tpu.memory_space<vmem>>, %arg8: memref<8x2xf32, #tpu.memory_space<vmem>>) attributes {dimension_semantics = [#tpu.dimension_semantics<parallel>], iteration_bounds = array<i64: 1>, scalar_prefetch = 0 : i64, scratch_operands = 0 : i64, tpu.core_type = #tpu.core_type<tc>, window_params = [{transform_indices = @transform_0, window_bounds = array<i64: 8, 2>}, {pipeline_mode = #tpu.pipeline_mode<synchronous>, transform_indices = @transform_1, window_bounds = array<i64: 2, 32>}, {pipeline_mode = #tpu.pipeline_mode<synchronous>, transform_indices = @transform_2, window_bounds = array<i64: 1, 32>}, {pipeline_mode = #tpu.pipeline_mode<synchronous>, transform_indices = @transform_3, window_bounds = array<i64: 32, 32>}, {pipeline_mode = #tpu.pipeline_mode<synchronous>, transform_indices = @transform_4, window_bounds = array<i64: 1, 32>}, {pipeline_mode = #tpu.pipeline_mode<synchronous>, transform_indices = @transform_5, window_bounds = array<i64: 32, 2>}, {pipeline_mode = #tpu.pipeline_mode<synchronous>, transform_indices = @transform_6, window_bounds = array<i64: 1, 2>}, {transform_indices = @transform_7, window_bounds = array<i64: 8, 2>}]} {
    %c0 = arith.constant 0 : index
    %c0_0 = arith.constant 0 : index
    %0 = vector.load %arg1[%c0, %c0_0] : memref<8x2xf32, #tpu.memory_space<vmem>>, vector<8x2xf32>
    %c0_1 = arith.constant 0 : index
    %c0_2 = arith.constant 0 : index
    %1 = vector.load %arg2[%c0_1, %c0_2] : memref<2x32xf32, #tpu.memory_space<vmem>>, vector<2x32xf32>
    %c0_3 = arith.constant 0 : index
    %c0_4 = arith.constant 0 : index
    %2 = vector.load %arg3[%c0_3, %c0_4] : memref<1x32xf32, #tpu.memory_space<vmem>>, vector<1x32xf32>
    %3 = vector.extract_strided_slice %0 {offsets = [0, 0], sizes = [8, 1], strides = [1, 1]} : vector<8x2xf32> to vector<8x1xf32>
    %4 = vector.extract_strided_slice %1 {offsets = [0, 0], sizes = [1, 32], strides = [1, 1]} : vector<2x32xf32> to vector<1x32xf32>
    %5 = vector.broadcast %3 : vector<8x1xf32> to vector<8x32xf32>
    %6 = vector.broadcast %4 : vector<1x32xf32> to vector<8x32xf32>
    %7 = arith.mulf %5, %6 : vector<8x32xf32>
    %8 = vector.broadcast %2 : vector<1x32xf32> to vector<8x32xf32>
    %9 = arith.addf %8, %7 : vector<8x32xf32>
    %10 = vector.extract_strided_slice %0 {offsets = [0, 1], sizes = [8, 1], strides = [1, 1]} : vector<8x2xf32> to vector<8x1xf32>
    %11 = vector.extract_strided_slice %1 {offsets = [1, 0], sizes = [1, 32], strides = [1, 1]} : vector<2x32xf32> to vector<1x32xf32>
    %12 = vector.broadcast %10 : vector<8x1xf32> to vector<8x32xf32>
    %13 = vector.broadcast %11 : vector<1x32xf32> to vector<8x32xf32>
    %14 = arith.mulf %12, %13 : vector<8x32xf32>
    %15 = arith.addf %9, %14 : vector<8x32xf32>
    %cst = arith.constant 0.000000e+00 : f32
    %16 = vector.broadcast %cst : f32 to vector<8x32xf32>
    %17 = arith.maximumf %15, %16 : vector<8x32xf32>
    %c0_5 = arith.constant 0 : index
    %c0_6 = arith.constant 0 : index
    %18 = vector.load %arg4[%c0_5, %c0_6] : memref<32x32xf32, #tpu.memory_space<vmem>>, vector<32x32xf32>
    %cst_7 = arith.constant dense<0.000000e+00> : vector<8x32xf32>
    %19 = tpu.matmul %17, %18, %cst_7 {dimension_numbers = #tpu.dot_dimension_numbers<[1], [0], [0], [1], [0, 0, 1, 1], [], []>} : vector<8x32xf32>, vector<32x32xf32>, vector<8x32xf32> -> vector<8x32xf32>
    %c0_8 = arith.constant 0 : index
    %c0_9 = arith.constant 0 : index
    %20 = vector.load %arg5[%c0_8, %c0_9] : memref<1x32xf32, #tpu.memory_space<vmem>>, vector<1x32xf32>
    %21 = vector.broadcast %20 : vector<1x32xf32> to vector<8x32xf32>
    %22 = arith.addf %19, %21 : vector<8x32xf32>
    %cst_10 = arith.constant 0.000000e+00 : f32
    %23 = vector.broadcast %cst_10 : f32 to vector<8x32xf32>
    %24 = arith.maximumf %22, %23 : vector<8x32xf32>
    %c0_11 = arith.constant 0 : index
    %c0_12 = arith.constant 0 : index
    %25 = vector.load %arg6[%c0_11, %c0_12] : memref<32x2xf32, #tpu.memory_space<vmem>>, vector<32x2xf32>
    %cst_13 = arith.constant dense<0.000000e+00> : vector<8x2xf32>
    %26 = tpu.matmul %24, %25, %cst_13 {dimension_numbers = #tpu.dot_dimension_numbers<[1], [0], [0], [1], [0, 0, 1, 1], [], []>} : vector<8x32xf32>, vector<32x2xf32>, vector<8x2xf32> -> vector<8x2xf32>
    %c0_14 = arith.constant 0 : index
    %c0_15 = arith.constant 0 : index
    %27 = vector.load %arg7[%c0_14, %c0_15] : memref<1x2xf32, #tpu.memory_space<vmem>>, vector<1x2xf32>
    %28 = vector.broadcast %27 : vector<1x2xf32> to vector<8x2xf32>
    %29 = arith.addf %26, %28 : vector<8x2xf32>
    %c0_16 = arith.constant 0 : index
    %c0_17 = arith.constant 0 : index
    %30 = vector.load %arg8[%c0_16, %c0_17] : memref<8x2xf32, #tpu.memory_space<vmem>>, vector<8x2xf32>
    tpu.vector_store %arg8[%c0_16, %c0_17], %29 {strides = array<i32>} : memref<8x2xf32, #tpu.memory_space<vmem>>, vector<8x2xf32>,
    return
  }
  func.func @transform_0(%arg0: i32) -> (i32, i32) {
    %c0_i32 = arith.constant 0 : i32
    %c0_i32_0 = arith.constant 0 : i32
    return %arg0, %c0_i32 : i32, i32
  }
  func.func @transform_1(%arg0: i32) -> (i32, i32) {
    %c0_i32 = arith.constant 0 : i32
    %c0_i32_0 = arith.constant 0 : i32
    %c0_i32_1 = arith.constant 0 : i32
    return %c0_i32, %c0_i32_0 : i32, i32
  }
  func.func @transform_2(%arg0: i32) -> (i32, i32) {
    %c0_i32 = arith.constant 0 : i32
    %c0_i32_0 = arith.constant 0 : i32
    %c0_i32_1 = arith.constant 0 : i32
    return %c0_i32, %c0_i32_0 : i32, i32
  }
  func.func @transform_3(%arg0: i32) -> (i32, i32) {
    %c0_i32 = arith.constant 0 : i32
    %c0_i32_0 = arith.constant 0 : i32
    %c0_i32_1 = arith.constant 0 : i32
    return %c0_i32, %c0_i32_0 : i32, i32
  }
  func.func @transform_4(%arg0: i32) -> (i32, i32) {
    %c0_i32 = arith.constant 0 : i32
    %c0_i32_0 = arith.constant 0 : i32
    %c0_i32_1 = arith.constant 0 : i32
    return %c0_i32, %c0_i32_0 : i32, i32
  }
  func.func @transform_5(%arg0: i32) -> (i32, i32) {
    %c0_i32 = arith.constant 0 : i32
    %c0_i32_0 = arith.constant 0 : i32
    %c0_i32_1 = arith.constant 0 : i32
    return %c0_i32, %c0_i32_0 : i32, i32
  }
  func.func @transform_6(%arg0: i32) -> (i32, i32) {
    %c0_i32 = arith.constant 0 : i32
    %c0_i32_0 = arith.constant 0 : i32
    %c0_i32_1 = arith.constant 0 : i32
    return %c0_i32, %c0_i32_0 : i32, i32
  }
  func.func @transform_7(%arg0: i32) -> (i32, i32) {
    %c0_i32 = arith.constant 0 : i32
    %c0_i32_0 = arith.constant 0 : i32
    return %arg0, %c0_i32 : i32, i32
  }
}

</mosaic_0001>

<llo_original>
// kernel: simple_rl_policy_forward.1
$region0: #{simple_rl_policy_forward.1}
  #allocation0 [shape = 'u32[]', space=smem, size = 0x4, offset = 0x4, fixed_abs, tag = 'smem constant byte address 0x4 - core index']
  #allocation1 [shape = 'u32[144,128]{1,0:T(1,128)}', space=vmem, size = 0x12000, scoped, tag = 'internal scratch']
  %s0 = inlined_call_operand.vmem [shape: f32[8,2], index: 0, kind: input, shape index: {}]
  %s1 = inlined_call_operand.vmem [shape: f32[2,32], index: 1, kind: input, shape index: {}]
  %s2 = inlined_call_operand.vmem [shape: f32[1,32], index: 2, kind: input, shape index: {}]
  %s3 = inlined_call_operand.vmem [shape: f32[32,32], index: 3, kind: input, shape index: {}]
  %s4 = inlined_call_operand.vmem [shape: f32[1,32], index: 4, kind: input, shape index: {}]
  %s5 = inlined_call_operand.vmem [shape: f32[32,2], index: 5, kind: input, shape index: {}]
  %s6 = inlined_call_operand.vmem [shape: f32[1,2], index: 6, kind: input, shape index: {}]
  %s7 = inlined_call_operand.vmem [shape: f32[8,2], index: 7, kind: output, shape index: {}]
  %s8 = sld [smem:[#allocation0]]
  $region38: #{simple_rl_policy_forward.1} parent=0
    _
  %s10 = ssub.s32 1, %s8
  %s11 = scalar_select 0, %s10, %s8
  // Predicated region
  $region2: #{simple_rl_policy_forward.1} parent=0 // pred_check
    _
  $region3: #{simple_rl_policy_forward.1} parent=0 // pred_check_branch
    %13 = sbr.rel (0) target = $region5
  $region4: #{simple_rl_policy_forward.1} parent=0 // pred_region
    _
  $region5: #{simple_rl_policy_forward.1} parent=0 // pred_fallthru
    _
  // Predicated region
  $region6: #{simple_rl_policy_forward.1} parent=0 // pred_check
    _
  $region7: #{simple_rl_policy_forward.1} parent=0 // pred_check_branch
    %15 = sbr.rel (0) target = $region9
  $region8: #{simple_rl_policy_forward.1} parent=0 // pred_region
    _
  $region9: #{simple_rl_policy_forward.1} parent=0 // pred_fallthru
    _
  // Predicated region
  $region10: #{simple_rl_policy_forward.1} parent=0 // pred_check
    _
  $region11: #{simple_rl_policy_forward.1} parent=0 // pred_check_branch
    %17 = sbr.rel (0) target = $region13
  $region12: #{simple_rl_policy_forward.1} parent=0 // pred_region
    _
  $region13: #{simple_rl_policy_forward.1} parent=0 // pred_fallthru
    _
  // Predicated region
  $region14: #{simple_rl_policy_forward.1} parent=0 // pred_check
    _
  $region15: #{simple_rl_policy_forward.1} parent=0 // pred_check_branch
    %19 = sbr.rel (0) target = $region17
  $region16: #{simple_rl_policy_forward.1} parent=0 // pred_region
    _
  $region17: #{simple_rl_policy_forward.1} parent=0 // pred_fallthru
    _
  // Predicated region
  $region18: #{simple_rl_policy_forward.1} parent=0 // pred_check
    _
  $region19: #{simple_rl_policy_forward.1} parent=0 // pred_check_branch
    %21 = sbr.rel (0) target = $region21
  $region20: #{simple_rl_policy_forward.1} parent=0 // pred_region
    _
  $region21: #{simple_rl_policy_forward.1} parent=0 // pred_fallthru
    _
  // Predicated region
  $region22: #{simple_rl_policy_forward.1} parent=0 // pred_check
    _
  $region23: #{simple_rl_policy_forward.1} parent=0 // pred_check_branch
    %23 = sbr.rel (0) target = $region25
  $region24: #{simple_rl_policy_forward.1} parent=0 // pred_region
    _
  $region25: #{simple_rl_policy_forward.1} parent=0 // pred_fallthru
    _
  // Predicated region
  $region26: #{simple_rl_policy_forward.1} parent=0 // pred_check
    _
  $region27: #{simple_rl_policy_forward.1} parent=0 // pred_check_branch
    %25 = sbr.rel (0) target = $region29
  $region28: #{simple_rl_policy_forward.1} parent=0 // pred_region
    _
  $region29: #{simple_rl_policy_forward.1} parent=0 // pred_fallthru
    _
  %v26 = vld [vmem:[%s0] sm:$0xff]
  %v27 = vld [vmem:[%s1] sm:$0x3]
  %v28 = vld [vmem:[%s2] sm:$0x1]
  %30 = vset.pattern.permute.xlu0 0
  %31 = vperm.xlu0 %30, %v26
  %v32 = vpop.permute.xlu0 %31
  %v34 = vlaneseq
  %v35 = vshrl.u32 %v34, 7
  %v36 = vsub.s32 0, %v35
  %v37 = vrot.slane %v27, %v36
  %v38 = vmul.f32 %v32, %v37
  %v40 = vlaneseq
  %v41 = vshrl.u32 %v40, 7
  %v42 = vsub.s32 0, %v41
  %v43 = vrot.slane %v28, %v42
  %v45 = vadd.f32 %v43, %v38
  %46 = vset.pattern.permute.xlu0 1
  %47 = vperm.xlu0 %46, %v26
  %v48 = vpop.permute.xlu0 %47
  %v50 = vlaneseq
  %v51 = vshrl.u32 %v50, 7
  %v52 = vsub.s32 1, %v51
  %v53 = vrot.slane %v27, %v52
  %v54 = vmul.f32 %v48, %v53
  %v55 = vadd.f32 %v45, %v54
  %v56 = vmax.f32 %v55, 0.0
  %v57 = vld [vmem:[%s3] sm:$0xff]
  %v58 = vld [vmem:[%s3 + $0x8] sm:$0xff]
  %v59 = vld [vmem:[%s3 + $0x10] sm:$0xff]
  %v60 = vld [vmem:[%s3 + $0x18] sm:$0xff]
  %v61 = vld [vmem:[%s4] sm:$0x1]
  %v63 = vlaneseq
  %v64 = vshrl.u32 %v63, 7
  %v65 = vsub.s32 0, %v64
  %v66 = vrot.slane %v61, %v65
  %vm68 = vcmask 261120
  %v70 = vsel %vm68, %v56, 0
  %72 = vmatprep.subr.mxu0 0.0
  %73 = vmatpush1.msra.mxu0 %v57
  %74 = vmatprep.subr.mxu0 0.0
  %75 = vmatpush1.msra.mxu0 %v58
  %76 = vmatprep.subr.mxu0 0.0
  %77 = vmatpush1.msra.mxu0 %v59
  %78 = vmatprep.subr.mxu0 0.0
  %79 = vmatpush1.msra.mxu0 %v60
  %80 = vmatprep.subr.mxu0 0.0
  %81 = vmatpush1.msra.mxu0 0.0
  %82 = vmatprep.subr.mxu0 0.0
  %83 = vmatpush1.msra.mxu0 0.0
  %84 = vmatprep.subr.mxu0 0.0
  %85 = vmatpush1.msra.mxu0 0.0
  %86 = vmatprep.subr.mxu0 0.0
  %87 = vmatpush1.msra.mxu0 0.0
  %88 = vmatprep.subr.mxu0 0.0
  %89 = vmatpush1.msra.mxu0 0.0
  %90 = vmatprep.subr.mxu0 0.0
  %91 = vmatpush1.msra.mxu0 0.0
  %92 = vmatprep.subr.mxu0 0.0
  %93 = vmatpush1.msra.mxu0 0.0
  %94 = vmatprep.subr.mxu0 0.0
  %95 = vmatpush1.msra.mxu0 0.0
  %96 = vmatprep.subr.mxu0 0.0
  %97 = vmatpush1.msra.mxu0 0.0
  %98 = vmatprep.subr.mxu0 0.0
  %99 = vmatpush1.msra.mxu0 0.0
  %100 = vmatprep.subr.mxu0 0.0
  %101 = vmatpush1.msra.mxu0 0.0
  %102 = vmatprep.subr.mxu0 0.0
  %103 = vmatpush1.msra.mxu0 0.0
  %104 = vmatprep.subr.mxu0 0.0
  %105 = vmatpush1.msra.mxu0 0.0
  %106 = vmatprep.subr.mxu0 0.0
  %107 = vmatpush1.msra.mxu0 0.0
  %108 = vmatprep.subr.mxu0 0.0
  %109 = vmatpush1.msra.mxu0 0.0
  %110 = vmatprep.subr.mxu0 0.0
  %111 = vmatpush1.msra.mxu0 0.0
  %112 = vmatprep.subr.mxu0 0.0
  %113 = vmatpush1.msra.mxu0 0.0
  %114 = vmatprep.subr.mxu0 0.0
  %115 = vmatpush1.msra.mxu0 0.0
  %116 = vmatprep.subr.mxu0 0.0
  %117 = vmatpush1.msra.mxu0 0.0
  %118 = vmatprep.subr.mxu0 0.0
  %119 = vmatpush1.msra.mxu0 0.0
  %120 = vmatprep.subr.mxu0 0.0
  %121 = vmatpush1.msra.mxu0 0.0
  %122 = vmatprep.subr.mxu0 0.0
  %123 = vmatpush1.msra.mxu0 0.0
  %124 = vmatprep.subr.mxu0 0.0
  %125 = vmatpush1.msra.mxu0 0.0
  %126 = vmatprep.subr.mxu0 0.0
  %127 = vmatpush1.msra.mxu0 0.0
  %128 = vmatprep.subr.mxu0 0.0
  %129 = vmatpush1.msra.mxu0 0.0
  %130 = vmatprep.subr.mxu0 0.0
  %131 = vmatpush1.msra.mxu0 0.0
  %132 = vmatprep.subr.mxu0 0.0
  %133 = vmatpush1.msra.mxu0 0.0
  %134 = vmatprep.subr.mxu0 0.0
  %135 = vmatpush1.msra.mxu0 0.0
  %136 = vmatprep.mubr.f32.mxu0 0.0
  %137 = vmatmul.mubr.f32.gmra.mrb[0].mxu0 %v70
  %v138 = vpop.f32.mrb[0].mxu0
  %v139 = vadd.f32 %v66, %v138
  %v140 = vpop.f32.mrb[0].mxu0
  %141 = vdwg.mxu0
  %v142 = vmax.f32 %v139, 0.0
  %v143 = vld [vmem:[%s5] sm:$0xff]
  %v144 = vld [vmem:[%s5 + $0x8] sm:$0xff]
  %v145 = vld [vmem:[%s5 + $0x10] sm:$0xff]
  %v146 = vld [vmem:[%s5 + $0x18] sm:$0xff]
  %v147 = vld [vmem:[%s6] sm:$0x1]
  %v149 = vlaneseq
  %v150 = vshrl.u32 %v149, 7
  %v151 = vsub.s32 0, %v150
  %v152 = vrot.slane %v147, %v151
  %v155 = vsel %vm68, %v142, 0
  %157 = vmatprep.subr.mxu0 0.0
  %158 = vmatpush1.msra.mxu0 %v143
  %159 = vmatprep.subr.mxu0 0.0
  %160 = vmatpush1.msra.mxu0 %v144
  %161 = vmatprep.subr.mxu0 0.0
  %162 = vmatpush1.msra.mxu0 %v145
  %163 = vmatprep.subr.mxu0 0.0
  %164 = vmatpush1.msra.mxu0 %v146
  %165 = vmatprep.subr.mxu0 0.0
  %166 = vmatpush1.msra.mxu0 0.0
  %167 = vmatprep.subr.mxu0 0.0
  %168 = vmatpush1.msra.mxu0 0.0
  %169 = vmatprep.subr.mxu0 0.0
  %170 = vmatpush1.msra.mxu0 0.0
  %171 = vmatprep.subr.mxu0 0.0
  %172 = vmatpush1.msra.mxu0 0.0
  %173 = vmatprep.subr.mxu0 0.0
  %174 = vmatpush1.msra.mxu0 0.0
  %175 = vmatprep.subr.mxu0 0.0
  %176 = vmatpush1.msra.mxu0 0.0
  %177 = vmatprep.subr.mxu0 0.0
  %178 = vmatpush1.msra.mxu0 0.0
  %179 = vmatprep.subr.mxu0 0.0
  %180 = vmatpush1.msra.mxu0 0.0
  %181 = vmatprep.subr.mxu0 0.0
  %182 = vmatpush1.msra.mxu0 0.0
  %183 = vmatprep.subr.mxu0 0.0
  %184 = vmatpush1.msra.mxu0 0.0
  %185 = vmatprep.subr.mxu0 0.0
  %186 = vmatpush1.msra.mxu0 0.0
  %187 = vmatprep.subr.mxu0 0.0
  %188 = vmatpush1.msra.mxu0 0.0
  %189 = vmatprep.subr.mxu0 0.0
  %190 = vmatpush1.msra.mxu0 0.0
  %191 = vmatprep.subr.mxu0 0.0
  %192 = vmatpush1.msra.mxu0 0.0
  %193 = vmatprep.subr.mxu0 0.0
  %194 = vmatpush1.msra.mxu0 0.0
  %195 = vmatprep.subr.mxu0 0.0
  %196 = vmatpush1.msra.mxu0 0.0
  %197 = vmatprep.subr.mxu0 0.0
  %198 = vmatpush1.msra.mxu0 0.0
  %199 = vmatprep.subr.mxu0 0.0
  %200 = vmatpush1.msra.mxu0 0.0
  %201 = vmatprep.subr.mxu0 0.0
  %202 = vmatpush1.msra.mxu0 0.0
  %203 = vmatprep.subr.mxu0 0.0
  %204 = vmatpush1.msra.mxu0 0.0
  %205 = vmatprep.subr.mxu0 0.0
  %206 = vmatpush1.msra.mxu0 0.0
  %207 = vmatprep.subr.mxu0 0.0
  %208 = vmatpush1.msra.mxu0 0.0
  %209 = vmatprep.subr.mxu0 0.0
  %210 = vmatpush1.msra.mxu0 0.0
  %211 = vmatprep.subr.mxu0 0.0
  %212 = vmatpush1.msra.mxu0 0.0
  %213 = vmatprep.subr.mxu0 0.0
  %214 = vmatpush1.msra.mxu0 0.0
  %215 = vmatprep.subr.mxu0 0.0
  %216 = vmatpush1.msra.mxu0 0.0
  %217 = vmatprep.subr.mxu0 0.0
  %218 = vmatpush1.msra.mxu0 0.0
  %219 = vmatprep.subr.mxu0 0.0
  %220 = vmatpush1.msra.mxu0 0.0
  %221 = vmatprep.mubr.f32.mxu0 0.0
  %222 = vmatmul.mubr.f32.gmra.mrb[0].mxu0 %v155
  %v223 = vpop.f32.mrb[0].mxu0
  %v224 = vadd.f32 %v152, %v223
  %v225 = vpop.f32.mrb[0].mxu0
  %226 = vdwg.mxu0
  %vm227 = vcmask 15360
  %228 = vst.msk [vmem:[%s7] sm:$0xff] %vm227, %v224
  // Predicated region
  $region30: #{simple_rl_policy_forward.1} parent=0 // pred_check
    _
  $region31: #{simple_rl_policy_forward.1} parent=0 // pred_check_branch
    %230 = sbr.rel (0) target = $region33
  $region32: #{simple_rl_policy_forward.1} parent=0 // pred_region
    _
  $region33: #{simple_rl_policy_forward.1} parent=0 // pred_fallthru
    _
  // Predicated region
  $region34: #{simple_rl_policy_forward.1} parent=0 // pred_check
    _
  $region35: #{simple_rl_policy_forward.1} parent=0 // pred_check_branch
    %232 = sbr.rel (0) target = $region37
  $region36: #{simple_rl_policy_forward.1} parent=0 // pred_region
    _
  $region37: #{simple_rl_policy_forward.1} parent=0 // pred_fallthru
    _

</llo_original>
